<compile_context>
chip_gen: v5e
topology: v5e:2x2
jax: 0.10.0
libtpu: 0.0.40
codegen_flags: <defaults>
</compile_context>

<pallas_src>
import functools
import math

import jax
import jax.numpy as jnp
from jax.experimental import pallas as pl
from jax.experimental.pallas import tpu as pltpu


LANE = 128
QTILE_ALIGN = 32  # int8 mask tiling is (32, 128); also satisfies bf16/f32 sublanes.


def _round_up(x, m):
    return ((x + m - 1) // m) * m


def _physical_vmem_bytes():
    try:
        return int(pltpu.get_tpu_info().vmem_capacity_bytes)
    except Exception:
        return 64 * 1024 * 1024  # conservative fallback (v7x TensorCore)


def _attn_kernel(*refs, tanh_clipping, compute_dtype, has_mask, cache_k):
    """Fused single-head attention-score kernel.

    refs layout:
      q_ref     : (1, tq,    D)      compute_dtype
      h_ref     : (1, T_pad, D)      compute_dtype
      wq_ref    : (D, D)             compute_dtype  (1/sqrt(D) pre-folded)
      wk_ref    : (D, D)             compute_dtype
      [mask_ref]: (1, tq, T_pad)     int8           (1 = attend, 0 = mask out)
      out_ref   : (1, tq, T_pad)     f32
      [k_scratch]: (D, T_pad)        compute_dtype  (K^T, persists across q tiles)
    """
    q_ref, h_ref, wq_ref, wk_ref = refs[:4]
    pos = 4
    mask_ref = None
    if has_mask:
        mask_ref = refs[pos]
        pos += 1
    out_ref = refs[pos]
    pos += 1
    k_scratch = refs[pos] if cache_k else None

    def project_k_t():
        # (T_pad, D) @ (D, D) -> (T_pad, D), one XLU transpose -> (D, T_pad).
        k = jnp.dot(h_ref[0].astype(compute_dtype), wk_ref[...],
                    preferred_element_type=jnp.float32)
        return k.astype(compute_dtype).T

    if cache_k:
        # INVARIANT: the query grid axis (axis 1) is innermost and marked
        # "arbitrary", so qt == 0 runs first for every batch element on the
        # same core and the cached K^T is valid for the remaining q tiles.
        # Never mark that axis "parallel" while this cache exists.
        @pl.when(pl.program_id(1) == 0)
        def _():
            k_scratch[...] = project_k_t()

        k_t = k_scratch[...]
    else:
        k_t = project_k_t()

    # Q projection for this query tile (scale already folded into wq).
    q_proj = jnp.dot(q_ref[0].astype(compute_dtype), wq_ref[...],
                     preferred_element_type=jnp.float32)             # (tq, D)

    # Canonical (tq, D) @ (D, T_pad) score matmul, f32 accumulation.
    u = jnp.dot(q_proj.astype(compute_dtype), k_t,
                preferred_element_type=jnp.float32)                   # (tq, T_pad)
    u = tanh_clipping * jnp.tanh(u)

    if mask_ref is not None:
        u = jnp.where(mask_ref[0] == 0, jnp.float32(-1e8), u)

    out_ref[0] = u.astype(out_ref.dtype)


def single_head_attention(
    q,
    w_query,
    w_key,
    h=None,
    mask=None,
    tanh_clipping=10.0,
    use_bf16_matmul=True,
    q_tile=None,
    return_padded=False,
):
    """Fused Pallas forward of SingleHeadAttention.

    q: (B, n_query, D), h: (B, graph, D) or None, mask: (B, n_query, graph)
    (or viewable as that), w_query / w_key: (D, D).
    Returns U: (B, n_query, graph) float32 (padded (B, nq_pad, T_pad) when
    return_padded=True — caller must then mask the padded columns itself).
    """
    q = jnp.asarray(q, jnp.float32)
    if h is None:
        h = q
    h = jnp.asarray(h, jnp.float32)

    B, n_query, D = q.shape
    Bh, T, Dh = h.shape
    assert Bh == B and Dh == D
    assert w_query.shape == (D, D) and w_key.shape == (D, D)

    norm_factor = 1.0 / math.sqrt(D)
    compute_dtype = jnp.bfloat16 if use_bf16_matmul else jnp.float32
    cbytes = jnp.dtype(compute_dtype).itemsize

    T_pad = _round_up(T, LANE)
    has_mask = mask is not None

    # --- query tile chosen against the chip's actual VMEM budget ------------
    phys_vmem = _physical_vmem_bytes()
    vmem_budget = int(phys_vmem * 0.8)   # ~51 MiB on v7x, ~102 MiB on v5e/v6e

    def footprint(tq_):
        f = (2 * tq_ * D * cbytes          # q tile (double-buffered)
             + 2 * T_pad * D * cbytes      # h tile
             + 2 * 2 * D * D * cbytes      # wq + wk (double-buffered)
             + 2 * tq_ * T_pad * 4         # out tile (f32)
             + T_pad * D * cbytes)         # K^T scratch
        if has_mask:
            f += 2 * tq_ * T_pad * 1       # int8 mask tile
        return f

    desired = q_tile if q_tile is not None else 512
    tq = _round_up(min(desired, _round_up(n_query, QTILE_ALIGN)), QTILE_ALIGN)
    while footprint(tq) > vmem_budget and tq > QTILE_ALIGN:
        tq = _round_up(max(QTILE_ALIGN, tq // 2), QTILE_ALIGN)
    # TODO(synk): if footprint(QTILE_ALIGN) still exceeds the budget (very
    # large T_pad*D), tile the graph dimension as a third "arbitrary" grid
    # axis instead of holding the full (T_pad, D) h block / K^T scratch.

    nq_pad = _round_up(n_query, tq)
    num_q_tiles = nq_pad // tq

    # K cache requires the query axis to be sequential ("arbitrary"); with a
    # single batch element that would idle v7x's second TensorCore, so for
    # B == 1 we recompute K per query tile and mark both axes "parallel".
    cache_k = (num_q_tiles > 1) and (B >= 2)
    dim_semantics = ("parallel", "arbitrary") if cache_k else ("parallel", "parallel")

    # --- inputs: pre-cast activations, lane/sublane padding ------------------
    qc = q.astype(compute_dtype)
    hc = h.astype(compute_dtype)
    if nq_pad != n_query:
        qc = jnp.pad(qc, ((0, 0), (0, nq_pad - n_query), (0, 0)))
    if T_pad != T:
        hc = jnp.pad(hc, ((0, 0), (0, T_pad - T), (0, 0)))
    # Fold 1/sqrt(D) into w_query: O(D^2) once instead of a VPU pass per tile.
    wq = (jnp.asarray(w_query, jnp.float32) * norm_factor).astype(compute_dtype)
    wk = jnp.asarray(w_key, jnp.float32).astype(compute_dtype)

    inputs = [qc, hc, wq, wk]
    in_specs = [
        pl.BlockSpec((1, tq, D), lambda b, qi: (b, qi, 0)),
        pl.BlockSpec((1, T_pad, D), lambda b, qi: (b, 0, 0)),
        # TODO(synk): mark the weight specs pipeline_mode=pl.Buffered(1) (their
        # block index never changes) once single-buffered pipeline_mode is
        # verified on the target jax build; saves 2*D*D*cbytes VMEM each.
        pl.BlockSpec((D, D), lambda b, qi: (0, 0)),
        pl.BlockSpec((D, D), lambda b, qi: (0, 0)),
    ]

    if has_mask:
        m = jnp.asarray(mask, jnp.float32).reshape(B, n_query, T)
        keep = (m >= 1e-8).astype(jnp.int8)          # 1 = attend, 0 = mask out
        if nq_pad != n_query or T_pad != T:
            keep = jnp.pad(keep,
                           ((0, 0), (0, nq_pad - n_query), (0, T_pad - T)),
                           constant_values=1)        # padded cells untouched
        inputs.append(keep)
        in_specs.append(pl.BlockSpec((1, tq, T_pad), lambda b, qi: (b, qi, 0)))

    out_spec = pl.BlockSpec((1, tq, T_pad), lambda b, qi: (b, qi, 0))
    out_shape = jax.ShapeDtypeStruct((B, nq_pad, T_pad), jnp.float32)

    scratch_shapes = [pltpu.VMEM((D, T_pad), compute_dtype)] if cache_k else []

    vmem_limit = int(min(phys_vmem, max(footprint(tq) + (4 << 20), 32 << 20)))

    # --- cost estimate --------------------------------------------------------
    k_proj_mults = B * (1 if cache_k else num_q_tiles)
    flops = int(2 * k_proj_mults * T_pad * D * D       # K projection
                + 2 * B * nq_pad * D * D               # Q projection
                + 2 * B * nq_pad * T_pad * D)          # Q K^T
    transcendentals = int(B * nq_pad * T_pad)          # tanh
    bytes_accessed = int(sum(int(a.size) * a.dtype.itemsize for a in inputs)
                         + B * nq_pad * T_pad * 4)
    cost = pl.CostEstimate(flops=flops, transcendentals=transcendentals,
                           bytes_accessed=bytes_accessed)

    kernel = functools.partial(
        _attn_kernel,
        tanh_clipping=float(tanh_clipping),
        compute_dtype=compute_dtype,
        has_mask=has_mask,
        cache_k=cache_k,
    )

    out = pl.pallas_call(
        kernel,
        out_shape=out_shape,
        grid=(B, num_q_tiles),
        in_specs=in_specs,
        out_specs=out_spec,
        scratch_shapes=scratch_shapes,
        compiler_params=pltpu.CompilerParams(
            dimension_semantics=dim_semantics,
            vmem_limit_bytes=vmem_limit,
        ),
        cost_estimate=cost,
    )(*inputs)

    if return_padded:
        # Padded graph columns carry 10*tanh(0)=0 scores (mask pads are "keep");
        # the caller must mask them.
        return out
    if nq_pad != n_query or T_pad != T:
        out = out[:, :n_query, :T]
    return out


def single_head_attention_ref(q, w_query, w_key, h=None, mask=None, tanh_clipping=10.0):
    """Pure-JAX reference matching the PyTorch forward (f32)."""
    if h is None:
        h = q
    D = q.shape[-1]
    norm_factor = 1.0 / math.sqrt(D)
    Q = jnp.einsum("bqd,de->bqe", q, w_query)
    K = jnp.einsum("bkd,de->bke", h, w_key)
    U = norm_factor * jnp.einsum("bqe,bke->bqk", Q, K)
    U = tanh_clipping * jnp.tanh(U)
    if mask is not None:
        mask = jnp.asarray(mask, jnp.float32).reshape(U.shape)
        U = jnp.where(mask < 1e-8, jnp.float32(-1e8), U)
    return U


if __name__ == "__main__":
    key = jax.random.PRNGKey(0)
    B, n_query, graph_size, D = 2, 8, 16, 32

    k1, k2, k3, k4, k5 = jax.random.split(key, 5)
    stdv = 1.0 / math.sqrt(D)  # PyTorch init: uniform(-stdv, stdv)
    w_query = jax.random.uniform(k1, (D, D), jnp.float32, -stdv, stdv)
    w_key = jax.random.uniform(k2, (D, D), jnp.float32, -stdv, stdv)
    q = jax.random.normal(k3, (B, n_query, D), dtype=jnp.float32)
    h = jax.random.normal(k4, (B, graph_size, D), dtype=jnp.float32)
    mask = (jax.random.uniform(k5, (B, n_query, graph_size)) > 0.3).astype(jnp.float32)

    # 1) f32-MXU path, self-attention (h=None), no mask — tighter check.
    out_f32 = single_head_attention(q, w_query, w_key, use_bf16_matmul=False)
    out_f32 = jax.block_until_ready(out_f32)
    ref_f32 = single_head_attention_ref(q, w_query, w_key)
    assert out_f32.shape == (B, n_query, n_query)
    assert jnp.allclose(out_f32, ref_f32, atol=3e-2, rtol=1e-2), "f32 path mismatch"

    # 2) bf16-MXU / f32-accumulate perf path, separate h, with int8 mask.
    out_bf16 = single_head_attention(
        q, w_query, w_key, h=h, mask=mask, use_bf16_matmul=True
    )
    out_bf16 = jax.block_until_ready(out_bf16)
    ref = single_head_attention_ref(q, w_query, w_key, h=h, mask=mask)
    assert out_bf16.shape == (B, n_query, graph_size)
    assert jnp.allclose(out_bf16, ref, atol=2e-1, rtol=5e-2), "bf16 path mismatch"

    print("KERNEL_OK")
</pallas_src>

<mosaic_0001>
module attributes {stable_mosaic.version = 11 : i64} {
  func.func @_attn_kernel(%arg0: i32, %arg1: i32, %arg2: memref<1x32x32xf32, #tpu.memory_space<vmem>>, %arg3: memref<1x128x32xf32, #tpu.memory_space<vmem>>, %arg4: memref<32x32xf32, #tpu.memory_space<vmem>>, %arg5: memref<32x32xf32, #tpu.memory_space<vmem>>, %arg6: memref<1x32x128xf32, #tpu.memory_space<vmem>>) attributes {dimension_semantics = [#tpu.dimension_semantics<parallel>, #tpu.dimension_semantics<parallel>], iteration_bounds = array<i64: 2, 1>, scalar_prefetch = 0 : i64, scratch_operands = 0 : i64, tpu.core_type = #tpu.core_type<tc>, window_params = [{transform_indices = @transform_0, window_bounds = array<i64: 1, 32, 32>}, {transform_indices = @transform_1, window_bounds = array<i64: 1, 128, 32>}, {pipeline_mode = #tpu.pipeline_mode<synchronous>, transform_indices = @transform_2, window_bounds = array<i64: 32, 32>}, {pipeline_mode = #tpu.pipeline_mode<synchronous>, transform_indices = @transform_3, window_bounds = array<i64: 32, 32>}, {transform_indices = @transform_4, window_bounds = array<i64: 1, 32, 128>}]} {
    %c0 = arith.constant 0 : index
    %c0_0 = arith.constant 0 : index
    %c0_1 = arith.constant 0 : index
    %0 = vector.load %arg3[%c0, %c0_0, %c0_1] : memref<1x128x32xf32, #tpu.memory_space<vmem>>, vector<1x128x32xf32>
    %1 = vector.shape_cast %0 : vector<1x128x32xf32> to vector<128x32xf32>
    %c0_2 = arith.constant 0 : index
    %c0_3 = arith.constant 0 : index
    %2 = vector.load %arg5[%c0_2, %c0_3] : memref<32x32xf32, #tpu.memory_space<vmem>>, vector<32x32xf32>
    %cst = arith.constant dense<0.000000e+00> : vector<128x32xf32>
    %3 = tpu.matmul %1, %2, %cst {dimension_numbers = #tpu.dot_dimension_numbers<[1], [0], [0], [1], [0, 0, 1, 1], [], []>} : vector<128x32xf32>, vector<32x32xf32>, vector<128x32xf32> -> vector<128x32xf32>
    %4 = tpu.transpose %3, [1, 0] : vector<128x32xf32> -> vector<32x128xf32>
    %c0_4 = arith.constant 0 : index
    %c0_5 = arith.constant 0 : index
    %c0_6 = arith.constant 0 : index
    %5 = vector.load %arg2[%c0_4, %c0_5, %c0_6] : memref<1x32x32xf32, #tpu.memory_space<vmem>>, vector<1x32x32xf32>
    %6 = vector.shape_cast %5 : vector<1x32x32xf32> to vector<32x32xf32>
    %c0_7 = arith.constant 0 : index
    %c0_8 = arith.constant 0 : index
    %7 = vector.load %arg4[%c0_7, %c0_8] : memref<32x32xf32, #tpu.memory_space<vmem>>, vector<32x32xf32>
    %cst_9 = arith.constant dense<0.000000e+00> : vector<32x32xf32>
    %8 = tpu.matmul %6, %7, %cst_9 {dimension_numbers = #tpu.dot_dimension_numbers<[1], [0], [0], [1], [0, 0, 1, 1], [], []>} : vector<32x32xf32>, vector<32x32xf32>, vector<32x32xf32> -> vector<32x32xf32>
    %cst_10 = arith.constant dense<0.000000e+00> : vector<32x128xf32>
    %9 = tpu.matmul %8, %4, %cst_10 {dimension_numbers = #tpu.dot_dimension_numbers<[1], [0], [0], [1], [0, 0, 1, 1], [], []>} : vector<32x32xf32>, vector<32x128xf32>, vector<32x128xf32> -> vector<32x128xf32>
    %10 = math.tanh %9 : vector<32x128xf32>
    %cst_11 = arith.constant 1.000000e+01 : f32
    %11 = vector.broadcast %cst_11 : f32 to vector<32x128xf32>
    %12 = arith.mulf %11, %10 : vector<32x128xf32>
    %c0_12 = arith.constant 0 : index
    %c0_13 = arith.constant 0 : index
    %c0_14 = arith.constant 0 : index
    %13 = vector.load %arg6[%c0_12, %c0_13, %c0_14] : memref<1x32x128xf32, #tpu.memory_space<vmem>>, vector<1x32x128xf32>
    %14 = vector.shape_cast %13 : vector<1x32x128xf32> to vector<32x128xf32>
    %15 = vector.shape_cast %12 : vector<32x128xf32> to vector<1x32x128xf32>
    tpu.vector_store %arg6[%c0_12, %c0_13, %c0_14], %15 {strides = array<i32>} : memref<1x32x128xf32, #tpu.memory_space<vmem>>, vector<1x32x128xf32>,
    return
  }
  func.func @transform_0(%arg0: i32, %arg1: i32) -> (i32, i32, i32) {
    %c0_i32 = arith.constant 0 : i32
    %c0_i32_0 = arith.constant 0 : i32
    return %arg0, %arg1, %c0_i32 : i32, i32, i32
  }
  func.func @transform_1(%arg0: i32, %arg1: i32) -> (i32, i32, i32) {
    %c0_i32 = arith.constant 0 : i32
    %c0_i32_0 = arith.constant 0 : i32
    %c0_i32_1 = arith.constant 0 : i32
    return %arg0, %c0_i32, %c0_i32_0 : i32, i32, i32
  }
  func.func @transform_2(%arg0: i32, %arg1: i32) -> (i32, i32) {
    %c0_i32 = arith.constant 0 : i32
    %c0_i32_0 = arith.constant 0 : i32
    %c0_i32_1 = arith.constant 0 : i32
    return %c0_i32, %c0_i32_0 : i32, i32
  }
  func.func @transform_3(%arg0: i32, %arg1: i32) -> (i32, i32) {
    %c0_i32 = arith.constant 0 : i32
    %c0_i32_0 = arith.constant 0 : i32
    %c0_i32_1 = arith.constant 0 : i32
    return %c0_i32, %c0_i32_0 : i32, i32
  }
  func.func @transform_4(%arg0: i32, %arg1: i32) -> (i32, i32, i32) {
    %c0_i32 = arith.constant 0 : i32
    %c0_i32_0 = arith.constant 0 : i32
    return %arg0, %arg1, %c0_i32 : i32, i32, i32
  }
}

</mosaic_0001>

<llo_original>
// kernel: tpu_custom_call.1
$region0: #{tpu_custom_call.1}
  #allocation0 [shape = 'u32[]', space=smem, size = 0x4, offset = 0x4, fixed_abs, tag = 'smem constant byte address 0x4 - core index']
  #allocation1 [shape = 'u32[72,128]{1,0:T(1,128)}', space=vmem, size = 0x9000, scoped, tag = 'internal scratch']
  %s0 = inlined_call_operand.vmem [shape: f32[2,32,32], index: 0, kind: input, shape index: {}]
  %s1 = inlined_call_operand.vmem [shape: f32[2,128,32], index: 1, kind: input, shape index: {}]
  %s2 = inlined_call_operand.vmem [shape: f32[32,32], index: 2, kind: input, shape index: {}]
  %s3 = inlined_call_operand.vmem [shape: f32[32,32], index: 3, kind: input, shape index: {}]
  %s4 = inlined_call_operand.hbm [shape: f32[2,32,128], index: 4, kind: output, shape index: {}]
  %s5 = sld [smem:[#allocation0]]
  $region49: #{tpu_custom_call.1} parent=0
    _
  %s7 = ssub.s32 1, %s5
  %s8 = scalar_select 0, %s7, %s5
  $region1: #{tpu_custom_call.1} parent=0
    #allocation2 [shape = 'u8[32768]{0}', space=vmem, size = 0x8000, scoped, tag = 'output window, operand 0']
    #allocation3 [shape = 's32[2]{0}', space=sflag, size = 0x8, scoped, tag = 'scoped memory for tpu_custom_call.1']
    %9 = vsyncpa [#allocation3], 0
    %s10 = scalar_lea.sflag [#allocation3], 1
    %11 = vsyncpa %s10, 0
    loop: start=0, step=1, limit=4
    $region2: #{tpu_custom_call.1} parent=1 // loop_pre_header
      _
    $region3: #{tpu_custom_call.1} parent=1 // loop_header
      %s13 = sphi 0, %s17
      %p14 = scmp.ge.s32.totalorder %s13, 4
      %s20 = sphi 0, %s32
      %s21 = sphi 0, %s28
      %s22 = sphi 0, %s20
      %s23 = sphi 0, %s21
      %s24 = sphi 0, %s22
      %s25 = sphi 0, %s23
      %s37 = sphi 0, %s39
      %s40 = sphi 0, %s37
      %s41 = sphi 0, %s40
      %s57 = sphi 0, %s41
      %s63 = sphi 0, %s65
      %s66 = sphi 0, %s63
      %s67 = sphi 0, %s66
      %s83 = sphi 0, %s67
      %s87 = sphi 0, %s87
      %s89 = sphi 0, %s87
      %s90 = sphi 0, %s89
      %s104 = sphi 0, %s90
      %s108 = sphi 0, %s108
      %s110 = sphi 0, %s108
      %s111 = sphi 0, %s110
      %s125 = sphi 0, %s111
      %s133 = sphi 0, %s135
      %s136 = sphi 0, %s133
      %s137 = sphi 0, %s136
      %s153 = sphi 0, %s137
    $region4: #{tpu_custom_call.1} parent=1 // loop_header_branch
      %16 = sbr.rel (%p14) target = $region8
    $region5: #{tpu_custom_call.1} parent=1 // loop_body
      %s18 = ssub.s32 %s13, 1
      %s19 = ssub.s32 %s13, 2
      %s26 = sadd.s32 1, %s21
      %p27 = scmp.ge.s32.totalorder %s26, 1
      %s28 = scalar_select %p27, 0, %s26
      %s29 = sadd.s32 1, %s20
      %s30 = scalar_select %p27, %s29, %s20
      %p31 = scmp.ge.s32.totalorder %s30, 2
      %s32 = scalar_select %p31, 0, %s30
      %s33 = ssub.s32 %s20, %s32
      %s34 = ssub.s32 %s21, %s28
      %s35 = sor.u32 %s33, %s34
      %p36 = scmp.eq.s32.totalorder %s35, 0
      %s38 = sadd.s32 %s37, 1
      %s39 = scalar_select %p36, %s37, %s38
      %p42 = pneg %p36
      %p43 = scmp.eq.s32.totalorder %s13, 1
      %p44 = por %p42, %p43
      %p45 = scmp.ne.s32.totalorder %s37, %s40
      %p46 = scmp.eq.s32.totalorder %s13, 0
      %p47 = por %p45, %p46
      %p48 = scmp.ne.s32.totalorder %s37, %s40
      %p49 = scmp.eq.s32.totalorder %s18, 1
      %p50 = por %p48, %p49
      %p51 = scmp.ne.s32.totalorder %s40, %s41
      %p52 = scmp.eq.s32.totalorder %s18, 0
      %p53 = por %p51, %p52
      %p54 = scmp.ne.s32.totalorder %s40, %s41
      %p55 = scmp.eq.s32.totalorder %s19, 1
      %p56 = por %p54, %p55
      %p58 = scmp.ne.s32.totalorder %s41, %s57
      %p59 = scmp.eq.s32.totalorder %s19, 0
      %p60 = por %p58, %p59
      %s61 = ssub.s32 %s20, %s32
      %p62 = scmp.eq.s32.totalorder %s61, 0
      %s64 = sadd.s32 %s63, 1
      %s65 = scalar_select %p62, %s63, %s64
      %p68 = pneg %p62
      %p69 = scmp.eq.s32.totalorder %s13, 1
      %p70 = por %p68, %p69
      %p71 = scmp.ne.s32.totalorder %s63, %s66
      %p72 = scmp.eq.s32.totalorder %s13, 0
      %p73 = por %p71, %p72
      %p74 = scmp.ne.s32.totalorder %s63, %s66
      %p75 = scmp.eq.s32.totalorder %s18, 1
      %p76 = por %p74, %p75
      %p77 = scmp.ne.s32.totalorder %s66, %s67
      %p78 = scmp.eq.s32.totalorder %s18, 0
      %p79 = por %p77, %p78
      %p80 = scmp.ne.s32.totalorder %s66, %s67
      %p81 = scmp.eq.s32.totalorder %s19, 1
      %p82 = por %p80, %p81
      %p84 = scmp.ne.s32.totalorder %s67, %s83
      %p85 = scmp.eq.s32.totalorder %s19, 0
      %p86 = por %p84, %p85
      %s88 = sadd.s32 %s87, 1
      %p91 = scmp.eq.s32.totalorder %s13, 1
      %p92 = scmp.ne.s32.totalorder %s87, %s89
      %p93 = scmp.eq.s32.totalorder %s13, 0
      %p94 = por %p92, %p93
      %p95 = scmp.ne.s32.totalorder %s87, %s89
      %p96 = scmp.eq.s32.totalorder %s18, 1
      %p97 = por %p95, %p96
      %p98 = scmp.ne.s32.totalorder %s89, %s90
      %p99 = scmp.eq.s32.totalorder %s18, 0
      %p100 = por %p98, %p99
      %p101 = scmp.ne.s32.totalorder %s89, %s90
      %p102 = scmp.eq.s32.totalorder %s19, 1
      %p103 = por %p101, %p102
      %p105 = scmp.ne.s32.totalorder %s90, %s104
      %p106 = scmp.eq.s32.totalorder %s19, 0
      %p107 = por %p105, %p106
      %s109 = sadd.s32 %s108, 1
      %p112 = scmp.eq.s32.totalorder %s13, 1
      %p113 = scmp.ne.s32.totalorder %s108, %s110
      %p114 = scmp.eq.s32.totalorder %s13, 0
      %p115 = por %p113, %p114
      %p116 = scmp.ne.s32.totalorder %s108, %s110
      %p117 = scmp.eq.s32.totalorder %s18, 1
      %p118 = por %p116, %p117
      %p119 = scmp.ne.s32.totalorder %s110, %s111
      %p120 = scmp.eq.s32.totalorder %s18, 0
      %p121 = por %p119, %p120
      %p122 = scmp.ne.s32.totalorder %s110, %s111
      %p123 = scmp.eq.s32.totalorder %s19, 1
      %p124 = por %p122, %p123
      %p126 = scmp.ne.s32.totalorder %s111, %s125
      %p127 = scmp.eq.s32.totalorder %s19, 0
      %p128 = por %p126, %p127
      %s129 = ssub.s32 %s20, %s32
      %s130 = ssub.s32 %s21, %s28
      %s131 = sor.u32 %s129, %s130
      %p132 = scmp.eq.s32.totalorder %s131, 0
      %s134 = sadd.s32 %s133, 1
      %s135 = scalar_select %p132, %s133, %s134
      %p138 = pneg %p132
      %p139 = scmp.eq.s32.totalorder %s13, 1
      %p140 = por %p138, %p139
      %p141 = scmp.ne.s32.totalorder %s133, %s136
      %p142 = scmp.eq.s32.totalorder %s13, 0
      %p143 = por %p141, %p142
      %p144 = scmp.ne.s32.totalorder %s133, %s136
      %p145 = scmp.eq.s32.totalorder %s18, 1
      %p146 = por %p144, %p145
      %p147 = scmp.ne.s32.totalorder %s136, %s137
      %p148 = scmp.eq.s32.totalorder %s18, 0
      %p149 = por %p147, %p148
      %p150 = scmp.ne.s32.totalorder %s136, %s137
      %p151 = scmp.eq.s32.totalorder %s19, 1
      %p152 = por %p150, %p151
      %p154 = scmp.ne.s32.totalorder %s137, %s153
      %p155 = scmp.eq.s32.totalorder %s19, 0
      %p156 = por %p154, %p155
      %p157 = scmp.le.s32.totalorder 1, %s13
      %p158 = scmp.lt.s32.totalorder %s13, 3
      %p159 = pnand %p157, %p158
      %p160 = pneg %p159
      // Predicated region
      $region9: #{tpu_custom_call.1} parent=5 // pred_check
        _
      $region10: #{tpu_custom_call.1} parent=5 // pred_check_branch
        %162 = sbr.rel (%p159) target = $region12
      $region11: #{tpu_custom_call.1} parent=5 // pred_region
        %s163 = ssub.s32 %s13, 1
        // Predicated region
        $region13: #{tpu_custom_call.1} parent=11 // pred_check
          %p164 = pneg %p100
        $region14: #{tpu_custom_call.1} parent=11 // pred_check_branch
          %166 = sbr.rel (%p164) target = $region16
        $region15: #{tpu_custom_call.1} parent=11 // pred_region
          _
        $region16: #{tpu_custom_call.1} parent=11 // pred_fallthru
          _
        // Predicated region
        $region17: #{tpu_custom_call.1} parent=11 // pred_check
          %p167 = pneg %p121
        $region18: #{tpu_custom_call.1} parent=11 // pred_check_branch
          %169 = sbr.rel (%p167) target = $region20
        $region19: #{tpu_custom_call.1} parent=11 // pred_region
          _
        $region20: #{tpu_custom_call.1} parent=11 // pred_fallthru
          _
      $region12: #{tpu_custom_call.1} parent=5 // pred_fallthru
        _
      %p170 = scmp.lt.s32.totalorder %s13, 2
      // Predicated region
      $region21: #{tpu_custom_call.1} parent=5 // pred_check
        %p171 = pneg %p170
      $region22: #{tpu_custom_call.1} parent=5 // pred_check_branch
        %173 = sbr.rel (%p171) target = $region24
      $region23: #{tpu_custom_call.1} parent=5 // pred_region
        // Predicated region
        $region25: #{tpu_custom_call.1} parent=23 // pred_check
          %p174 = pneg %p47
        $region26: #{tpu_custom_call.1} parent=23 // pred_check_branch
          %176 = sbr.rel (%p174) target = $region28
        $region27: #{tpu_custom_call.1} parent=23 // pred_region
          %s177 = smul.u32 4, %s21
          %p178 = scmp.lt.s32.totalorder %s20, 1
          %s179 = scalar_select %p178, %s20, 1
          %p180 = scmp.lt.s32.totalorder %s177, 3
          %s181 = scalar_select %p180, %s177, 3
          %s182 = smul.addr %s179, 4
          %s183 = sadd.s32 %s181, %s182
          %s184 = smul.addr %s183, 8
          %s185 = scalar_lea.vmem %s0, %s184
          %s186 = smul.u32 4, %s21
        $region28: #{tpu_custom_call.1} parent=23 // pred_fallthru
          _
        // Predicated region
        $region29: #{tpu_custom_call.1} parent=23 // pred_check
          %p187 = pneg %p73
        $region30: #{tpu_custom_call.1} parent=23 // pred_check_branch
          %189 = sbr.rel (%p187) target = $region32
        $region31: #{tpu_custom_call.1} parent=23 // pred_region
          %p190 = scmp.lt.s32.totalorder %s20, 1
          %s191 = scalar_select %p190, %s20, 1
          %s192 = smul.addr %s191, 16
          %s193 = smul.addr %s192, 8
          %s194 = scalar_lea.vmem %s1, %s193
        $region32: #{tpu_custom_call.1} parent=23 // pred_fallthru
          _
      $region24: #{tpu_custom_call.1} parent=5 // pred_fallthru
        _
      %p195 = scmp.le.s32.totalorder 1, %s13
      %p196 = scmp.lt.s32.totalorder %s13, 3
      %p197 = pnand %p195, %p196
      %p198 = pneg %p197
      // Predicated region
      $region33: #{tpu_custom_call.1} parent=5 // pred_check
        _
      $region34: #{tpu_custom_call.1} parent=5 // pred_check_branch
        %200 = sbr.rel (%p197) target = $region36
      $region35: #{tpu_custom_call.1} parent=5 // pred_region
        %s201 = ssub.s32 %s13, 1
        %s202 = smul.u32 4, %s23
        %p203 = scmp.lt.s32.totalorder %s22, 1
        %s204 = scalar_select %p203, %s22, 1
        %p205 = scmp.lt.s32.totalorder %s202, 3
        %s206 = scalar_select %p205, %s202, 3
        %s207 = smul.addr %s204, 4
        %s208 = sadd.s32 %s206, %s207
        %s209 = smul.addr %s208, 8
        %s210 = scalar_lea.vmem %s0, %s209
        %p211 = pneg %p53
        %p212 = pneg %p50
        %p213 = scmp.lt.s32.totalorder %s22, 1
        %s214 = scalar_select %p213, %s22, 1
        %s215 = smul.addr %s214, 16
        %s216 = smul.addr %s215, 8
        %s217 = scalar_lea.vmem %s1, %s216
        %p218 = pneg %p79
        %p219 = pneg %p76
        %p220 = pneg %p100
        %p221 = pneg %p97
        %p222 = pneg %p121
        %p223 = pneg %p118
        %p224 = pneg %p149
        %p225 = pneg %p146
        %s226 = sand.u32 %s136, 1
        %s227 = scalar_lea.sflag [#allocation3], %s226
        %s228 = sand.u32 %s136, 1
        %s229 = smul.addr %s228, 32
        %s230 = scalar_lea.vmem [#allocation2], %s229
        %s231 = smul.u32 4, %s23
        %p232 = scmp.lt.s32.totalorder %s22, 1
        %s233 = scalar_select %p232, %s22, 1
        %p234 = scmp.lt.s32.totalorder %s231, 3
        %s235 = scalar_select %p234, %s231, 3
        %s236 = smul.addr %s233, 4
        %s237 = sadd.s32 %s235, %s236
        %s238 = smul.addr %s237, 8
        %s239 = scalar_lea.vmem %s0, %s238
        %s240 = smul.u32 4, %s23
        %p241 = scmp.lt.s32.totalorder %s22, 1
        %s242 = scalar_select %p241, %s22, 1
        %s243 = smul.addr %s242, 16
        %s244 = smul.addr %s243, 8
        %s245 = scalar_lea.vmem %s1, %s244
        %s246 = smul.u32 4, %s23
        %v247 = vld [vmem:[%s245] sm:$0xff]
        %v248 = vld [vmem:[%s245 + $0x8] sm:$0xff]
        %v249 = vld [vmem:[%s245 + $0x10] sm:$0xff]
        %v250 = vld [vmem:[%s245 + $0x18] sm:$0xff]
        %v251 = vld [vmem:[%s245 + $0x20] sm:$0xff]
        %v252 = vld [vmem:[%s245 + $0x28] sm:$0xff]
        %v253 = vld [vmem:[%s245 + $0x30] sm:$0xff]
        %v254 = vld [vmem:[%s245 + $0x38] sm:$0xff]
        %v255 = vld [vmem:[%s245 + $0x40] sm:$0xff]
        %v256 = vld [vmem:[%s245 + $0x48] sm:$0xff]
        %v257 = vld [vmem:[%s245 + $0x50] sm:$0xff]
        %v258 = vld [vmem:[%s245 + $0x58] sm:$0xff]
        %v259 = vld [vmem:[%s245 + $0x60] sm:$0xff]
        %v260 = vld [vmem:[%s245 + $0x68] sm:$0xff]
        %v261 = vld [vmem:[%s245 + $0x70] sm:$0xff]
        %v262 = vld [vmem:[%s245 + $0x78] sm:$0xff]
        %v263 = vld [vmem:[%s3] sm:$0xff]
        %v264 = vld [vmem:[%s3 + $0x8] sm:$0xff]
        %v265 = vld [vmem:[%s3 + $0x10] sm:$0xff]
        %v266 = vld [vmem:[%s3 + $0x18] sm:$0xff]
        %vm267 = vcmask 261120
        %v269 = vsel %vm267, %v247, 0
        %v272 = vsel %vm267, %v248, 0
        %v275 = vsel %vm267, %v249, 0
        %v278 = vsel %vm267, %v250, 0
        %v281 = vsel %vm267, %v251, 0
        %v284 = vsel %vm267, %v252, 0
        %v287 = vsel %vm267, %v253, 0
        %v290 = vsel %vm267, %v254, 0
        %v293 = vsel %vm267, %v255, 0
        %v296 = vsel %vm267, %v256, 0
        %v299 = vsel %vm267, %v257, 0
        %v302 = vsel %vm267, %v258, 0
        %v305 = vsel %vm267, %v259, 0
        %v308 = vsel %vm267, %v260, 0
        %v311 = vsel %vm267, %v261, 0
        %v314 = vsel %vm267, %v262, 0
        %316 = vmatpush.msra.mxu0 0.0
        %317 = vmatpush.msra.mxu0 0.0
        %318 = vmatpush.msra.mxu0 0.0
        %319 = vmatpush.msra.mxu0 0.0
        %320 = vmatpush.msra.mxu0 0.0
        %321 = vmatpush.msra.mxu0 0.0
        %322 = vmatpush.msra.mxu0 0.0
        %323 = vmatpush.msra.mxu0 0.0
        %324 = vmatpush.msra.mxu0 0.0
        %325 = vmatpush.msra.mxu0 0.0
        %326 = vmatpush.msra.mxu0 0.0
        %327 = vmatpush.msra.mxu0 0.0
        %328 = vmatpush.msra.mxu0 %v266
        %329 = vmatpush.msra.mxu0 %v265
        %330 = vmatpush.msra.mxu0 %v264
        %331 = vmatpush.msra.mxu0 %v263
        %332 = vmatmul.f32.gmra.mxu0 %v269
        %v333 = vpop.f32.mrf.mxu0
        %v334 = vadd.f32 0.0, %v333
        %335 = vmatmul.f32.gmra.mxu0 %v272
        %v336 = vpop.f32.mrf.mxu0
        %v337 = vadd.f32 0.0, %v336
        %338 = vmatmul.f32.gmra.mxu0 %v275
        %v339 = vpop.f32.mrf.mxu0
        %v340 = vadd.f32 0.0, %v339
        %341 = vmatmul.f32.gmra.mxu0 %v278
        %v342 = vpop.f32.mrf.mxu0
        %v343 = vadd.f32 0.0, %v342
        %344 = vmatmul.f32.gmra.mxu0 %v281
        %v345 = vpop.f32.mrf.mxu0
        %v346 = vadd.f32 0.0, %v345
        %347 = vmatmul.f32.gmra.mxu0 %v284
        %v348 = vpop.f32.mrf.mxu0
        %v349 = vadd.f32 0.0, %v348
        %350 = vmatmul.f32.gmra.mxu0 %v287
        %v351 = vpop.f32.mrf.mxu0
        %v352 = vadd.f32 0.0, %v351
        %353 = vmatmul.f32.gmra.mxu0 %v290
        %v354 = vpop.f32.mrf.mxu0
        %v355 = vadd.f32 0.0, %v354
        %356 = vmatmul.f32.gmra.mxu0 %v293
        %v357 = vpop.f32.mrf.mxu0
        %v358 = vadd.f32 0.0, %v357
        %359 = vmatmul.f32.gmra.mxu0 %v296
        %v360 = vpop.f32.mrf.mxu0
        %v361 = vadd.f32 0.0, %v360
        %362 = vmatmul.f32.gmra.mxu0 %v299
        %v363 = vpop.f32.mrf.mxu0
        %v364 = vadd.f32 0.0, %v363
        %365 = vmatmul.f32.gmra.mxu0 %v302
        %v366 = vpop.f32.mrf.mxu0
        %v367 = vadd.f32 0.0, %v366
        %368 = vmatmul.f32.gmra.mxu0 %v305
        %v369 = vpop.f32.mrf.mxu0
        %v370 = vadd.f32 0.0, %v369
        %371 = vmatmul.f32.gmra.mxu0 %v308
        %v372 = vpop.f32.mrf.mxu0
        %v373 = vadd.f32 0.0, %v372
        %374 = vmatmul.f32.gmra.mxu0 %v311
        %v375 = vpop.f32.mrf.mxu0
        %v376 = vadd.f32 0.0, %v375
        %377 = vmatmul.f32.gmra.mxu0 %v314
        %v378 = vpop.f32.mrf.mxu0
        %v379 = vadd.f32 0.0, %v378
        %380 = vdwg.mxu0
        %v381 = vld [vmem:[%s239] sm:$0xff]
        %v382 = vld [vmem:[%s239 + $0x8] sm:$0xff]
        %v383 = vld [vmem:[%s239 + $0x10] sm:$0xff]
        %v384 = vld [vmem:[%s239 + $0x18] sm:$0xff]
        %v385 = vld [vmem:[%s2] sm:$0xff]
        %v386 = vld [vmem:[%s2 + $0x8] sm:$0xff]
        %v387 = vld [vmem:[%s2 + $0x10] sm:$0xff]
        %v388 = vld [vmem:[%s2 + $0x18] sm:$0xff]
        %v390 = vsel %vm267, %v381, 0
        %v393 = vsel %vm267, %v382, 0
        %v396 = vsel %vm267, %v383, 0
        %v399 = vsel %vm267, %v384, 0
        %401 = vmatpush.msra.mxu0 0.0
        %402 = vmatpush.msra.mxu0 0.0
        %403 = vmatpush.msra.mxu0 0.0
        %404 = vmatpush.msra.mxu0 0.0
        %405 = vmatpush.msra.mxu0 0.0
        %406 = vmatpush.msra.mxu0 0.0
        %407 = vmatpush.msra.mxu0 0.0
        %408 = vmatpush.msra.mxu0 0.0
        %409 = vmatpush.msra.mxu0 0.0
        %410 = vmatpush.msra.mxu0 0.0
        %411 = vmatpush.msra.mxu0 0.0
        %412 = vmatpush.msra.mxu0 0.0
        %413 = vmatpush.msra.mxu0 %v388
        %414 = vmatpush.msra.mxu0 %v387
        %415 = vmatpush.msra.mxu0 %v386
        %416 = vmatpush.msra.mxu0 %v385
        %417 = vmatmul.f32.gmra.mxu0 %v390
        %v418 = vpop.f32.mrf.mxu0
        %v419 = vadd.f32 0.0, %v418
        %420 = vmatmul.f32.gmra.mxu0 %v393
        %v421 = vpop.f32.mrf.mxu0
        %v422 = vadd.f32 0.0, %v421
        %423 = vmatmul.f32.gmra.mxu0 %v396
        %v424 = vpop.f32.mrf.mxu0
        %v425 = vadd.f32 0.0, %v424
        %426 = vmatmul.f32.gmra.mxu0 %v399
        %v427 = vpop.f32.mrf.mxu0
        %v428 = vadd.f32 0.0, %v427
        %429 = vdwg.mxu0
        %v431 = vsel %vm267, %v419, 0
        %v434 = vsel %vm267, %v422, 0
        %v437 = vsel %vm267, %v425, 0
        %v440 = vsel %vm267, %v428, 0
        %v443 = vsel %vm267, %v334, 0
        %v446 = vsel %vm267, %v337, 0
        %v449 = vsel %vm267, %v340, 0
        %v452 = vsel %vm267, %v343, 0
        %v455 = vsel %vm267, %v346, 0
        %v458 = vsel %vm267, %v349, 0
        %v461 = vsel %vm267, %v352, 0
        %v464 = vsel %vm267, %v355, 0
        %v467 = vsel %vm267, %v358, 0
        %v470 = vsel %vm267, %v361, 0
        %v473 = vsel %vm267, %v364, 0
        %v476 = vsel %vm267, %v367, 0
        %v479 = vsel %vm267, %v370, 0
        %v482 = vsel %vm267, %v373, 0
        %v485 = vsel %vm267, %v376, 0
        %v488 = vsel %vm267, %v379, 0
        %490 = vmatpush.xpose.msra.mxu0 %v488
        %491 = vmatpush.xpose.msra.mxu0 %v485
        %492 = vmatpush.xpose.msra.mxu0 %v482
        %493 = vmatpush.xpose.msra.mxu0 %v479
        %494 = vmatpush.xpose.msra.mxu0 %v476
        %495 = vmatpush.xpose.msra.mxu0 %v473
        %496 = vmatpush.xpose.msra.mxu0 %v470
        %497 = vmatpush.xpose.msra.mxu0 %v467
        %498 = vmatpush.xpose.msra.mxu0 %v464
        %499 = vmatpush.xpose.msra.mxu0 %v461
        %500 = vmatpush.xpose.msra.mxu0 %v458
        %501 = vmatpush.xpose.msra.mxu0 %v455
        %502 = vmatpush.xpose.msra.mxu0 %v452
        %503 = vmatpush.xpose.msra.mxu0 %v449
        %504 = vmatpush.xpose.msra.mxu0 %v446
        %505 = vmatpush.xpose.msra.mxu0 %v443
        %506 = vmatmul.f32.gmra.mxu0 %v431
        %v507 = vpop.f32.mrf.mxu0
        %v508 = vadd.f32 0.0, %v507
        %509 = vmatmul.f32.gmra.mxu0 %v434
        %v510 = vpop.f32.mrf.mxu0
        %v511 = vadd.f32 0.0, %v510
        %512 = vmatmul.f32.gmra.mxu0 %v437
        %v513 = vpop.f32.mrf.mxu0
        %v514 = vadd.f32 0.0, %v513
        %515 = vmatmul.f32.gmra.mxu0 %v440
        %v516 = vpop.f32.mrf.mxu0
        %v517 = vadd.f32 0.0, %v516
        %518 = vdwg.mxu0
        %v519 = vtanh.pop %v508
        %v520 = vtanh.pop %v511
        %v521 = vtanh.pop %v514
        %v522 = vtanh.pop %v517
        %v523 = vmul.f32 %v519, 10.0
        %v524 = vmul.f32 %v520, 10.0
        %v525 = vmul.f32 %v521, 10.0
        %v526 = vmul.f32 %v522, 10.0
        %527 = vst [vmem:[%s230] sm:$0xff] %v523
        %528 = vst [vmem:[%s230 + $0x8] sm:$0xff] %v524
        %529 = vst [vmem:[%s230 + $0x10] sm:$0xff] %v525
        %530 = vst [vmem:[%s230 + $0x18] sm:$0xff] %v526
        %s531 = sand.u32 %s136, 1
        %s532 = scalar_lea.sflag [#allocation3], %s531
        %s533 = sand.u32 %s136, 1
        %s534 = smul.addr %s533, 32
        %s535 = scalar_lea.vmem [#allocation2], %s534
        // Predicated region
        $region37: #{tpu_custom_call.1} parent=35 // pred_check
          %p536 = pneg %p146
        $region38: #{tpu_custom_call.1} parent=35 // pred_check_branch
          %538 = sbr.rel (%p536) target = $region40
        $region39: #{tpu_custom_call.1} parent=35 // pred_region
          %s539 = smul.u32 4, %s23
          %541 = vsyncadd %s532, 0
          %s542 = smul.addr %s22, 4
          %s543 = sadd.s32 %s539, %s542
          %s544 = smul.addr %s543, 8
          %s545 = scalar_lea.hbm %s4, %s544
          %s546 = sshll.u32 %s535, 4
          %s547 = int_to_ptr.vmem [resolvable:$true] %s546
          %s548 = sshll.u32 %s545, 4
          %s549 = int_to_ptr.hbm [resolvable:$true] %s548
          %554 = dma.vmem_to_hbm [thread:$0]  %s547, 512, %s549, %s532, 128, 128, 8
        $region40: #{tpu_custom_call.1} parent=35 // pred_fallthru
          _
      $region36: #{tpu_custom_call.1} parent=5 // pred_fallthru
        _
      %p555 = scmp.le.s32.totalorder 2, %s13
      // Predicated region
      $region41: #{tpu_custom_call.1} parent=5 // pred_check
        %p556 = pneg %p555
      $region42: #{tpu_custom_call.1} parent=5 // pred_check_branch
        %558 = sbr.rel (%p556) target = $region44
      $region43: #{tpu_custom_call.1} parent=5 // pred_region
        %s559 = ssub.s32 %s13, 2
        // Predicated region
        $region45: #{tpu_custom_call.1} parent=43 // pred_check
          %p560 = pneg %p152
        $region46: #{tpu_custom_call.1} parent=43 // pred_check_branch
          %562 = sbr.rel (%p560) target = $region48
        $region47: #{tpu_custom_call.1} parent=43 // pred_region
          %s563 = sand.u32 %s137, 1
          %s564 = scalar_lea.sflag [#allocation3], %s563
          %s565 = sand.u32 %s137, 1
          %s566 = smul.addr %s565, 32
          %s567 = scalar_lea.vmem [#allocation2], %s566
          %569 = dma.done %s564, 512
        $region48: #{tpu_custom_call.1} parent=43 // pred_fallthru
          _
      $region44: #{tpu_custom_call.1} parent=5 // pred_fallthru
        _
    $region6: #{tpu_custom_call.1} parent=1 // loop_footer
      %s17 = sadd.s32 1, %s13
    $region7: #{tpu_custom_call.1} parent=1 // loop_footer_branch
      %12 = sbr.rel target = $region3
    $region8: #{tpu_custom_call.1} parent=1 // loop_exit
      _
    %570 = vsyncpa [#allocation3], 1
    %s571 = scalar_lea.sflag [#allocation3], 1
    %572 = vsyncpa %s571, 1

</llo_original>
